<compile_context>
chip_gen: v5e
topology: v5e:2x2
jax: 0.10.0
libtpu: 0.0.40
codegen_flags: <defaults>
</compile_context>

<pallas_src>
import jax
import jax.numpy as jnp
from jax.experimental import pallas as pl
from jax.experimental.pallas import tpu as pltpu


def make_layernorm_kernel(eps: float):
    def kernel(x_ref, g_ref, b_ref, o_ref):
        # x_ref : (1, C, TN)    g_ref / b_ref : (C, 1)    o_ref : (1, C, TN)
        #
        # Pass 1: per-pixel statistics over the channel (sublane) axis.
        # Only the (1, TN) rows survive this pass.
        x = x_ref[0].astype(jnp.float32)                       # (C, TN)
        inv_c = 1.0 / x.shape[0]
        mean = jnp.sum(x, axis=0, keepdims=True) * inv_c       # (1, TN)  XLU
        d = x - mean                                           # VPU
        var = jnp.sum(d * d, axis=0, keepdims=True) * inv_c    # (1, TN)  XLU
        std = jnp.sqrt(var)                                    # EUP
        # PyTorch adds eps to *std* (not var); keep those numerics exactly.
        inv = pl.reciprocal(std + eps, approx=False)           # (1, TN)

        # Pass 2: normalize.  Re-read x from VMEM instead of reusing the big
        # (C, TN) centered tile from pass 1, so the register file only holds
        # the (1, TN) stats rows across the reductions (no spill at large TN).
        x2 = x_ref[0].astype(jnp.float32)
        g = g_ref[...].astype(jnp.float32)                     # (C, 1)
        b = b_ref[...].astype(jnp.float32)                     # (C, 1)
        o_ref[0] = ((x2 - mean) * inv * g + b).astype(o_ref.dtype)

    return kernel


def _vmem_capacity_bytes() -> int:
    """Physical VMEM of the attached TPU; conservative (v7x = 64 MiB) fallback."""
    try:
        cap = getattr(pltpu.get_tpu_info(), "vmem_capacity_bytes", None)
        if cap:
            return int(cap)
    except Exception:
        pass
    return 64 << 20


def _pick_tile(n: int, c: int, itemsize: int, vmem_cap: int) -> int:
    """Lane-dense spatial tile TN (a multiple of 128, or the full extent n).

    Per-block byte budget targets ~2-8 MiB so each grid step moves enough HBM
    traffic to amortize the fixed per-step pipeline overhead, while 2 input +
    2 output double-buffers (4 blocks) stay comfortably inside the smallest
    generation's VMEM (v7x: 64 MiB physical).
    """
    block_budget = min(8 << 20, vmem_cap // 12)
    max_tn = max(128, (block_budget // (c * itemsize)) // 128 * 128)
    if n <= max_tn:
        return n                          # full extent: always a legal block dim
    # Prefer the largest multiple-of-128 divisor (no ragged tail) ...
    t = max_tn
    while t >= 128:
        if n % t == 0:
            break
        t -= 128
    if t >= 128 and n % t == 0 and t >= max_tn // 2:
        return t
    # ... otherwise take the full-budget lane-dense tile and let Pallas mask
    # the ragged last block (safe: pixel columns are independent).
    return max_tn


def layer_norm(x, g, b, *, eps: float = 1e-5):
    """x: (B, C, H, W).  g, b: (1, C, 1, 1).  Returns (B, C, H, W) in x.dtype."""
    B, C, H, W = x.shape
    N = H * W
    itemsize = jnp.dtype(x.dtype).itemsize

    # Free reshapes: NCHW is contiguous over (H, W); channel params -> (C, 1).
    x_t = x.reshape(B, C, N)
    g2 = g.reshape(C, 1)
    b2 = b.reshape(C, 1)

    vmem_cap = _vmem_capacity_bytes()
    TN = _pick_tile(N, C, itemsize, vmem_cap)
    n_tiles = pl.cdiv(N, TN)

    # v7x has 2 TensorCores, each with its own HBM path: make sure the
    # parallel grid has at least 2 steps so neither core sits idle.
    if B * n_tiles < 2 and N >= 256:
        half = (N + 1) // 2
        TN = ((half + 127) // 128) * 128
        n_tiles = pl.cdiv(N, TN)

    # VMEM needed: 2x double-buffered input + 2x double-buffered output blocks
    # plus headroom for g/b and Mosaic internal scratch.  Raise the scoped
    # limit above the 16/32 MiB defaults so the large tiles actually compile,
    # but stay well under the physical capacity of the attached generation.
    block_bytes = C * TN * itemsize
    needed = 4 * block_bytes + (2 << 20)
    vmem_limit = min(max(needed, 32 << 20), (vmem_cap * 3) // 4)
    vmem_limit = max(vmem_limit, needed)

    kernel = make_layernorm_kernel(eps)

    out = pl.pallas_call(
        kernel,
        out_shape=jax.ShapeDtypeStruct((B, C, N), x.dtype),
        grid_spec=pltpu.PrefetchScalarGridSpec(
            num_scalar_prefetch=0,
            grid=(B, n_tiles),
            in_specs=[
                # TODO(synk): add pipeline_mode=pl.Buffered(3) here only if an
                # xprof trace on v7x shows exposed DMA gaps between grid steps.
                pl.BlockSpec((1, C, TN), lambda bi, ti: (bi, 0, ti)),
                pl.BlockSpec((C, 1), lambda bi, ti: (0, 0)),   # resident in VMEM
                pl.BlockSpec((C, 1), lambda bi, ti: (0, 0)),   # resident in VMEM
            ],
            out_specs=pl.BlockSpec((1, C, TN), lambda bi, ti: (bi, 0, ti)),
        ),
        compiler_params=pltpu.CompilerParams(
            dimension_semantics=("parallel", "parallel"),
            vmem_limit_bytes=int(vmem_limit),
        ),
        cost_estimate=pl.CostEstimate(
            flops=8 * B * C * N,            # sub, 2 muls for var, normalize madd
            transcendentals=2 * B * N,      # sqrt + reciprocal per pixel
            bytes_accessed=(2 * B * C * N + 2 * C) * itemsize,
        ),
    )(x_t, g2, b2)

    return out.reshape(B, C, H, W)


def reference(x, g, b, *, eps: float = 1e-5):
    """Pure-JAX reference mirroring the PyTorch module exactly."""
    mean = jnp.mean(x, axis=1, keepdims=True)
    var = jnp.mean((x - mean) ** 2, axis=1, keepdims=True)   # unbiased=False
    std = jnp.sqrt(var)
    return (x - mean) / (std + eps) * g + b


if __name__ == "__main__":
    B, C, H, W = 2, 32, 16, 16
    eps = 1e-5

    key = jax.random.PRNGKey(0)
    kx, kg, kb = jax.random.split(key, 3)

    x = jax.random.normal(kx, (B, C, H, W), dtype=jnp.float32)
    # Module inits g=ones, b=zeros; perturb so scale/shift are exercised.
    g = 1.0 + 0.1 * jax.random.normal(kg, (1, C, 1, 1), dtype=jnp.float32)
    b = 0.1 * jax.random.normal(kb, (1, C, 1, 1), dtype=jnp.float32)

    out = jax.block_until_ready(layer_norm(x, g, b, eps=eps))

    ref = reference(x, g, b, eps=eps)
    assert out.shape == (B, C, H, W)
    max_err = float(jnp.max(jnp.abs(out - ref)))
    assert jnp.allclose(out, ref, atol=1e-4, rtol=1e-4), max_err

    print("KERNEL_OK")
</pallas_src>

<mosaic_0001>
module attributes {stable_mosaic.version = 11 : i64} {
  func.func @kernel(%arg0: i32, %arg1: i32, %arg2: memref<1x32x256xf32, #tpu.memory_space<vmem>>, %arg3: memref<32x1xf32, #tpu.memory_space<vmem>>, %arg4: memref<32x1xf32, #tpu.memory_space<vmem>>, %arg5: memref<1x32x256xf32, #tpu.memory_space<vmem>>) attributes {dimension_semantics = [#tpu.dimension_semantics<parallel>, #tpu.dimension_semantics<parallel>], iteration_bounds = array<i64: 2, 1>, scalar_prefetch = 0 : i64, scratch_operands = 0 : i64, tpu.core_type = #tpu.core_type<tc>, window_params = [{transform_indices = @transform_0, window_bounds = array<i64: 1, 32, 256>}, {pipeline_mode = #tpu.pipeline_mode<synchronous>, transform_indices = @transform_1, window_bounds = array<i64: 32, 1>}, {pipeline_mode = #tpu.pipeline_mode<synchronous>, transform_indices = @transform_2, window_bounds = array<i64: 32, 1>}, {transform_indices = @transform_3, window_bounds = array<i64: 1, 32, 256>}]} {
    %c0 = arith.constant 0 : index
    %c0_0 = arith.constant 0 : index
    %c0_1 = arith.constant 0 : index
    %0 = vector.load %arg2[%c0, %c0_0, %c0_1] : memref<1x32x256xf32, #tpu.memory_space<vmem>>, vector<1x32x256xf32>
    %1 = vector.shape_cast %0 : vector<1x32x256xf32> to vector<32x256xf32>
    %cst = arith.constant dense<0.000000e+00> : vector<256xf32>
    %2 = vector.multi_reduction <add>, %1, %cst [0] : vector<32x256xf32> to vector<256xf32>
    %3 = vector.shape_cast %2 : vector<256xf32> to vector<1x256xf32>
    %cst_2 = arith.constant 3.125000e-02 : f32
    %4 = vector.broadcast %cst_2 : f32 to vector<1x256xf32>
    %5 = arith.mulf %3, %4 : vector<1x256xf32>
    %6 = vector.broadcast %5 : vector<1x256xf32> to vector<32x256xf32>
    %7 = arith.subf %1, %6 : vector<32x256xf32>
    %8 = arith.mulf %7, %7 : vector<32x256xf32>
    %cst_3 = arith.constant dense<0.000000e+00> : vector<256xf32>
    %9 = vector.multi_reduction <add>, %8, %cst_3 [0] : vector<32x256xf32> to vector<256xf32>
    %10 = vector.shape_cast %9 : vector<256xf32> to vector<1x256xf32>
    %cst_4 = arith.constant 3.125000e-02 : f32
    %11 = vector.broadcast %cst_4 : f32 to vector<1x256xf32>
    %12 = arith.mulf %10, %11 : vector<1x256xf32>
    %13 = math.sqrt %12 : vector<1x256xf32>
    %cst_5 = arith.constant 9.99999974E-6 : f32
    %14 = vector.broadcast %cst_5 : f32 to vector<1x256xf32>
    %15 = arith.addf %13, %14 : vector<1x256xf32>
    %16 = tpu.reciprocal %15 : vector<1x256xf32> -> vector<1x256xf32>
    %c0_6 = arith.constant 0 : index
    %c0_7 = arith.constant 0 : index
    %c0_8 = arith.constant 0 : index
    %17 = vector.load %arg2[%c0_6, %c0_7, %c0_8] : memref<1x32x256xf32, #tpu.memory_space<vmem>>, vector<1x32x256xf32>
    %18 = vector.shape_cast %17 : vector<1x32x256xf32> to vector<32x256xf32>
    %c0_9 = arith.constant 0 : index
    %c0_10 = arith.constant 0 : index
    %19 = vector.load %arg3[%c0_9, %c0_10] : memref<32x1xf32, #tpu.memory_space<vmem>>, vector<32x1xf32>
    %c0_11 = arith.constant 0 : index
    %c0_12 = arith.constant 0 : index
    %20 = vector.load %arg4[%c0_11, %c0_12] : memref<32x1xf32, #tpu.memory_space<vmem>>, vector<32x1xf32>
    %21 = vector.broadcast %5 : vector<1x256xf32> to vector<32x256xf32>
    %22 = arith.subf %18, %21 : vector<32x256xf32>
    %23 = vector.broadcast %16 : vector<1x256xf32> to vector<32x256xf32>
    %24 = arith.mulf %22, %23 : vector<32x256xf32>
    %25 = vector.broadcast %19 : vector<32x1xf32> to vector<32x256xf32>
    %26 = arith.mulf %24, %25 : vector<32x256xf32>
    %27 = vector.broadcast %20 : vector<32x1xf32> to vector<32x256xf32>
    %28 = arith.addf %26, %27 : vector<32x256xf32>
    %c0_13 = arith.constant 0 : index
    %c0_14 = arith.constant 0 : index
    %c0_15 = arith.constant 0 : index
    %29 = vector.load %arg5[%c0_13, %c0_14, %c0_15] : memref<1x32x256xf32, #tpu.memory_space<vmem>>, vector<1x32x256xf32>
    %30 = vector.shape_cast %29 : vector<1x32x256xf32> to vector<32x256xf32>
    %31 = vector.shape_cast %28 : vector<32x256xf32> to vector<1x32x256xf32>
    tpu.vector_store %arg5[%c0_13, %c0_14, %c0_15], %31 {strides = array<i32>} : memref<1x32x256xf32, #tpu.memory_space<vmem>>, vector<1x32x256xf32>,
    return
  }
  func.func @transform_0(%arg0: i32, %arg1: i32) -> (i32, i32, i32) {
    %c0_i32 = arith.constant 0 : i32
    %c0_i32_0 = arith.constant 0 : i32
    return %arg0, %c0_i32, %arg1 : i32, i32, i32
  }
  func.func @transform_1(%arg0: i32, %arg1: i32) -> (i32, i32) {
    %c0_i32 = arith.constant 0 : i32
    %c0_i32_0 = arith.constant 0 : i32
    %c0_i32_1 = arith.constant 0 : i32
    return %c0_i32, %c0_i32_0 : i32, i32
  }
  func.func @transform_2(%arg0: i32, %arg1: i32) -> (i32, i32) {
    %c0_i32 = arith.constant 0 : i32
    %c0_i32_0 = arith.constant 0 : i32
    %c0_i32_1 = arith.constant 0 : i32
    return %c0_i32, %c0_i32_0 : i32, i32
  }
  func.func @transform_3(%arg0: i32, %arg1: i32) -> (i32, i32, i32) {
    %c0_i32 = arith.constant 0 : i32
    %c0_i32_0 = arith.constant 0 : i32
    return %arg0, %c0_i32, %arg1 : i32, i32, i32
  }
}

</mosaic_0001>

<llo_original>
// kernel: tpu_custom_call.1
$region0: #{tpu_custom_call.1}
  #allocation0 [shape = 'u32[]', space=smem, size = 0x4, offset = 0x4, fixed_abs, tag = 'smem constant byte address 0x4 - core index']
  #allocation1 [shape = 'u32[72,128]{1,0:T(1,128)}', space=vmem, size = 0x9000, scoped, tag = 'internal scratch']
  %s0 = inlined_call_operand.hbm [shape: f32[2,32,256], index: 0, kind: input, shape index: {}]
  %s1 = inlined_call_operand.vmem [shape: f32[32,1], index: 1, kind: input, shape index: {}]
  %s2 = inlined_call_operand.vmem [shape: f32[32,1], index: 2, kind: input, shape index: {}]
  %s3 = inlined_call_operand.hbm [shape: f32[2,32,256], index: 3, kind: output, shape index: {}]
  %s4 = sld [smem:[#allocation0]]
  $region49: #{tpu_custom_call.1} parent=0
    _
  %s6 = ssub.s32 1, %s4
  %s7 = scalar_select 0, %s6, %s4
  $region1: #{tpu_custom_call.1} parent=0
    #allocation2 [shape = 'u8[65536]{0}', space=vmem, size = 0x10000, scoped, tag = 'input window, operand 0']
    #allocation3 [shape = 's32[2]{0}', space=sflag, size = 0x8, scoped, tag = 'scoped memory for tpu_custom_call.1']
    #allocation4 [shape = 's32[2]{0}', space=sflag, size = 0x8, scoped, tag = 'scoped memory for tpu_custom_call.1']
    #allocation5 [shape = 'u8[65536]{0}', space=vmem, size = 0x10000, scoped, tag = 'output window, operand 0']
    %8 = vsyncpa [#allocation3], 0
    %s9 = scalar_lea.sflag [#allocation3], 1
    %10 = vsyncpa %s9, 0
    %11 = vsyncpa [#allocation4], 0
    %s12 = scalar_lea.sflag [#allocation4], 1
    %13 = vsyncpa %s12, 0
    loop: start=0, step=1, limit=4
    $region2: #{tpu_custom_call.1} parent=1 // loop_pre_header
      _
    $region3: #{tpu_custom_call.1} parent=1 // loop_header
      %s15 = sphi 0, %s19
      %p16 = scmp.ge.s32.totalorder %s15, 4
      %s22 = sphi 0, %s34
      %s23 = sphi 0, %s30
      %s24 = sphi 0, %s22
      %s25 = sphi 0, %s23
      %s26 = sphi 0, %s24
      %s27 = sphi 0, %s25
      %s39 = sphi 0, %s41
      %s42 = sphi 0, %s39
      %s43 = sphi 0, %s42
      %s59 = sphi 0, %s43
      %s63 = sphi 0, %s63
      %s65 = sphi 0, %s63
      %s66 = sphi 0, %s65
      %s80 = sphi 0, %s66
      %s84 = sphi 0, %s84
      %s86 = sphi 0, %s84
      %s87 = sphi 0, %s86
      %s101 = sphi 0, %s87
      %s109 = sphi 0, %s111
      %s112 = sphi 0, %s109
      %s113 = sphi 0, %s112
      %s129 = sphi 0, %s113
    $region4: #{tpu_custom_call.1} parent=1 // loop_header_branch
      %18 = sbr.rel (%p16) target = $region8
    $region5: #{tpu_custom_call.1} parent=1 // loop_body
      %s20 = ssub.s32 %s15, 1
      %s21 = ssub.s32 %s15, 2
      %s28 = sadd.s32 1, %s23
      %p29 = scmp.ge.s32.totalorder %s28, 1
      %s30 = scalar_select %p29, 0, %s28
      %s31 = sadd.s32 1, %s22
      %s32 = scalar_select %p29, %s31, %s22
      %p33 = scmp.ge.s32.totalorder %s32, 2
      %s34 = scalar_select %p33, 0, %s32
      %s35 = ssub.s32 %s22, %s34
      %s36 = ssub.s32 %s23, %s30
      %s37 = sor.u32 %s35, %s36
      %p38 = scmp.eq.s32.totalorder %s37, 0
      %s40 = sadd.s32 %s39, 1
      %s41 = scalar_select %p38, %s39, %s40
      %p44 = pneg %p38
      %p45 = scmp.eq.s32.totalorder %s15, 1
      %p46 = por %p44, %p45
      %p47 = scmp.ne.s32.totalorder %s39, %s42
      %p48 = scmp.eq.s32.totalorder %s15, 0
      %p49 = por %p47, %p48
      %p50 = scmp.ne.s32.totalorder %s39, %s42
      %p51 = scmp.eq.s32.totalorder %s20, 1
      %p52 = por %p50, %p51
      %p53 = scmp.ne.s32.totalorder %s42, %s43
      %p54 = scmp.eq.s32.totalorder %s20, 0
      %p55 = por %p53, %p54
      %p56 = scmp.ne.s32.totalorder %s42, %s43
      %p57 = scmp.eq.s32.totalorder %s21, 1
      %p58 = por %p56, %p57
      %p60 = scmp.ne.s32.totalorder %s43, %s59
      %p61 = scmp.eq.s32.totalorder %s21, 0
      %p62 = por %p60, %p61
      %s64 = sadd.s32 %s63, 1
      %p67 = scmp.eq.s32.totalorder %s15, 1
      %p68 = scmp.ne.s32.totalorder %s63, %s65
      %p69 = scmp.eq.s32.totalorder %s15, 0
      %p70 = por %p68, %p69
      %p71 = scmp.ne.s32.totalorder %s63, %s65
      %p72 = scmp.eq.s32.totalorder %s20, 1
      %p73 = por %p71, %p72
      %p74 = scmp.ne.s32.totalorder %s65, %s66
      %p75 = scmp.eq.s32.totalorder %s20, 0
      %p76 = por %p74, %p75
      %p77 = scmp.ne.s32.totalorder %s65, %s66
      %p78 = scmp.eq.s32.totalorder %s21, 1
      %p79 = por %p77, %p78
      %p81 = scmp.ne.s32.totalorder %s66, %s80
      %p82 = scmp.eq.s32.totalorder %s21, 0
      %p83 = por %p81, %p82
      %s85 = sadd.s32 %s84, 1
      %p88 = scmp.eq.s32.totalorder %s15, 1
      %p89 = scmp.ne.s32.totalorder %s84, %s86
      %p90 = scmp.eq.s32.totalorder %s15, 0
      %p91 = por %p89, %p90
      %p92 = scmp.ne.s32.totalorder %s84, %s86
      %p93 = scmp.eq.s32.totalorder %s20, 1
      %p94 = por %p92, %p93
      %p95 = scmp.ne.s32.totalorder %s86, %s87
      %p96 = scmp.eq.s32.totalorder %s20, 0
      %p97 = por %p95, %p96
      %p98 = scmp.ne.s32.totalorder %s86, %s87
      %p99 = scmp.eq.s32.totalorder %s21, 1
      %p100 = por %p98, %p99
      %p102 = scmp.ne.s32.totalorder %s87, %s101
      %p103 = scmp.eq.s32.totalorder %s21, 0
      %p104 = por %p102, %p103
      %s105 = ssub.s32 %s22, %s34
      %s106 = ssub.s32 %s23, %s30
      %s107 = sor.u32 %s105, %s106
      %p108 = scmp.eq.s32.totalorder %s107, 0
      %s110 = sadd.s32 %s109, 1
      %s111 = scalar_select %p108, %s109, %s110
      %p114 = pneg %p108
      %p115 = scmp.eq.s32.totalorder %s15, 1
      %p116 = por %p114, %p115
      %p117 = scmp.ne.s32.totalorder %s109, %s112
      %p118 = scmp.eq.s32.totalorder %s15, 0
      %p119 = por %p117, %p118
      %p120 = scmp.ne.s32.totalorder %s109, %s112
      %p121 = scmp.eq.s32.totalorder %s20, 1
      %p122 = por %p120, %p121
      %p123 = scmp.ne.s32.totalorder %s112, %s113
      %p124 = scmp.eq.s32.totalorder %s20, 0
      %p125 = por %p123, %p124
      %p126 = scmp.ne.s32.totalorder %s112, %s113
      %p127 = scmp.eq.s32.totalorder %s21, 1
      %p128 = por %p126, %p127
      %p130 = scmp.ne.s32.totalorder %s113, %s129
      %p131 = scmp.eq.s32.totalorder %s21, 0
      %p132 = por %p130, %p131
      %p133 = scmp.le.s32.totalorder 1, %s15
      %p134 = scmp.lt.s32.totalorder %s15, 3
      %p135 = pnand %p133, %p134
      %p136 = pneg %p135
      // Predicated region
      $region9: #{tpu_custom_call.1} parent=5 // pred_check
        _
      $region10: #{tpu_custom_call.1} parent=5 // pred_check_branch
        %138 = sbr.rel (%p135) target = $region12
      $region11: #{tpu_custom_call.1} parent=5 // pred_region
        %s139 = ssub.s32 %s15, 1
        // Predicated region
        $region13: #{tpu_custom_call.1} parent=11 // pred_check
          %p140 = pneg %p76
        $region14: #{tpu_custom_call.1} parent=11 // pred_check_branch
          %142 = sbr.rel (%p140) target = $region16
        $region15: #{tpu_custom_call.1} parent=11 // pred_region
          _
        $region16: #{tpu_custom_call.1} parent=11 // pred_fallthru
          _
        // Predicated region
        $region17: #{tpu_custom_call.1} parent=11 // pred_check
          %p143 = pneg %p97
        $region18: #{tpu_custom_call.1} parent=11 // pred_check_branch
          %145 = sbr.rel (%p143) target = $region20
        $region19: #{tpu_custom_call.1} parent=11 // pred_region
          _
        $region20: #{tpu_custom_call.1} parent=11 // pred_fallthru
          _
      $region12: #{tpu_custom_call.1} parent=5 // pred_fallthru
        _
      %p146 = scmp.lt.s32.totalorder %s15, 2
      // Predicated region
      $region21: #{tpu_custom_call.1} parent=5 // pred_check
        %p147 = pneg %p146
      $region22: #{tpu_custom_call.1} parent=5 // pred_check_branch
        %149 = sbr.rel (%p147) target = $region24
      $region23: #{tpu_custom_call.1} parent=5 // pred_region
        // Predicated region
        $region25: #{tpu_custom_call.1} parent=23 // pred_check
          %p150 = pneg %p49
        $region26: #{tpu_custom_call.1} parent=23 // pred_check_branch
          %152 = sbr.rel (%p150) target = $region28
        $region27: #{tpu_custom_call.1} parent=23 // pred_region
          %s153 = sand.u32 %s39, 1
          %s154 = scalar_lea.sflag [#allocation3], %s153
          %s155 = sand.u32 %s39, 1
          %s156 = smul.addr %s155, 64
          %s157 = scalar_lea.vmem [#allocation2], %s156
          %s158 = smul.u32 2, %s23
          %160 = vsyncadd %s154, 0
          %s161 = smul.addr %s22, 8
          %s162 = sadd.s32 %s158, %s161
          %s163 = smul.addr %s162, 8
          %s164 = scalar_lea.hbm %s0, %s163
          %s165 = sshll.u32 %s164, 4
          %s166 = int_to_ptr.hbm [resolvable:$true] %s165
          %s167 = sshll.u32 %s157, 4
          %s168 = int_to_ptr.vmem [resolvable:$true] %s167
          %173 = dma.hbm_to_vmem [thread:$0]  %s166, 1024, %s168, %s154, 256, 256, 16
        $region28: #{tpu_custom_call.1} parent=23 // pred_fallthru
          _
      $region24: #{tpu_custom_call.1} parent=5 // pred_fallthru
        _
      %p174 = scmp.le.s32.totalorder 1, %s15
      %p175 = scmp.lt.s32.totalorder %s15, 3
      %p176 = pnand %p174, %p175
      %p177 = pneg %p176
      // Predicated region
      $region29: #{tpu_custom_call.1} parent=5 // pred_check
        _
      $region30: #{tpu_custom_call.1} parent=5 // pred_check_branch
        %179 = sbr.rel (%p176) target = $region32
      $region31: #{tpu_custom_call.1} parent=5 // pred_region
        %s180 = ssub.s32 %s15, 1
        %s181 = sand.u32 %s42, 1
        %s182 = scalar_lea.sflag [#allocation3], %s181
        %s183 = sand.u32 %s42, 1
        %s184 = smul.addr %s183, 64
        %s185 = scalar_lea.vmem [#allocation2], %s184
        // Predicated region
        $region33: #{tpu_custom_call.1} parent=31 // pred_check
          %p186 = pneg %p55
        $region34: #{tpu_custom_call.1} parent=31 // pred_check_branch
          %188 = sbr.rel (%p186) target = $region36
        $region35: #{tpu_custom_call.1} parent=31 // pred_region
          %190 = dma.done %s182, 1024
        $region36: #{tpu_custom_call.1} parent=31 // pred_fallthru
          _
        %s191 = sand.u32 %s42, 1
        %s192 = scalar_lea.sflag [#allocation3], %s191
        %s193 = sand.u32 %s42, 1
        %s194 = smul.addr %s193, 64
        %s195 = scalar_lea.vmem [#allocation2], %s194
        %p196 = pneg %p55
        %p197 = pneg %p52
        %p198 = pneg %p76
        %p199 = pneg %p73
        %p200 = pneg %p97
        %p201 = pneg %p94
        %p202 = pneg %p125
        %p203 = pneg %p122
        %s204 = sand.u32 %s112, 1
        %s205 = scalar_lea.sflag [#allocation4], %s204
        %s206 = sand.u32 %s112, 1
        %s207 = smul.addr %s206, 64
        %s208 = scalar_lea.vmem [#allocation5], %s207
        %s209 = smul.u32 2, %s25
        %s210 = smul.u32 2, %s25
        %v211 = vld [vmem:[%s185] sm:$0xff]
        %v212 = vld [vmem:[%s185 + $0x8] sm:$0xff]
        %v213 = vld [vmem:[%s185 + $0x10] sm:$0xff]
        %v214 = vld [vmem:[%s185 + $0x18] sm:$0xff]
        %v215 = vld [vmem:[%s185 + $0x20] sm:$0xff]
        %v216 = vld [vmem:[%s185 + $0x28] sm:$0xff]
        %v217 = vld [vmem:[%s185 + $0x30] sm:$0xff]
        %v218 = vld [vmem:[%s185 + $0x38] sm:$0xff]
        %v219 = vadd.f32 %v211, %v213
        %v220 = vadd.f32 %v219, %v215
        %v221 = vadd.f32 %v220, %v217
        %v222 = vrot.slane %v221, 4
        %v223 = vadd.f32 %v221, %v222
        %v224 = vrot.slane %v223, 2
        %v225 = vadd.f32 %v223, %v224
        %v226 = vrot.slane %v225, 1
        %v227 = vadd.f32 %v225, %v226
        %v228 = vadd.f32 %v212, %v214
        %v229 = vadd.f32 %v228, %v216
        %v230 = vadd.f32 %v229, %v218
        %v231 = vrot.slane %v230, 4
        %v232 = vadd.f32 %v230, %v231
        %v233 = vrot.slane %v232, 2
        %v234 = vadd.f32 %v232, %v233
        %v235 = vrot.slane %v234, 1
        %v236 = vadd.f32 %v234, %v235
        %v237 = vmul.f32 %v227, 0.03125
        %v238 = vmul.f32 %v236, 0.03125
        %v239 = vsub.f32 %v211, %v237
        %v240 = vsub.f32 %v212, %v238
        %v241 = vsub.f32 %v213, %v237
        %v242 = vsub.f32 %v214, %v238
        %v243 = vsub.f32 %v215, %v237
        %v244 = vsub.f32 %v216, %v238
        %v245 = vsub.f32 %v217, %v237
        %v246 = vsub.f32 %v218, %v238
        %v247 = vmul.f32 %v239, %v239
        %v248 = vmul.f32 %v240, %v240
        %v249 = vmul.f32 %v241, %v241
        %v250 = vmul.f32 %v242, %v242
        %v251 = vmul.f32 %v243, %v243
        %v252 = vmul.f32 %v244, %v244
        %v253 = vmul.f32 %v245, %v245
        %v254 = vmul.f32 %v246, %v246
        %v255 = vadd.f32 %v247, %v249
        %v256 = vadd.f32 %v255, %v251
        %v257 = vadd.f32 %v256, %v253
        %v258 = vrot.slane %v257, 4
        %v259 = vadd.f32 %v257, %v258
        %v260 = vrot.slane %v259, 2
        %v261 = vadd.f32 %v259, %v260
        %v262 = vrot.slane %v261, 1
        %v263 = vadd.f32 %v261, %v262
        %v264 = vadd.f32 %v248, %v250
        %v265 = vadd.f32 %v264, %v252
        %v266 = vadd.f32 %v265, %v254
        %v267 = vrot.slane %v266, 4
        %v268 = vadd.f32 %v266, %v267
        %v269 = vrot.slane %v268, 2
        %v270 = vadd.f32 %v268, %v269
        %v271 = vrot.slane %v270, 1
        %v272 = vadd.f32 %v270, %v271
        %v273 = vmul.f32 %v263, 0.03125
        %v274 = vmul.f32 %v272, 0.03125
        %v275 = vrsqrt.pop %v273
        %v276 = vmul.f32 %v275, %v273
        %v277 = vmul.f32 %v276, %v275
        %v278 = vmul.f32 0.5, %v277
        %v279 = vsub.f32 1.5, %v278
        %v280 = vmul.f32 %v275, %v279
        %v281 = vmul.f32 %v273, %v280
        %vm282 = vcmp.eq.f32.partialorder %v273, inf
        %v283 = vsel %vm282, %v273, %v281
        %vm284 = vcmp.eq.f32.partialorder %v273, 0.0
        %v285 = vand.u32 %v273, 2147483648
        %v286 = vsel %vm284, %v285, %v283
        %v287 = vrsqrt.pop %v274
        %v288 = vmul.f32 %v287, %v274
        %v289 = vmul.f32 %v288, %v287
        %v290 = vmul.f32 0.5, %v289
        %v291 = vsub.f32 1.5, %v290
        %v292 = vmul.f32 %v287, %v291
        %v293 = vmul.f32 %v274, %v292
        %vm294 = vcmp.eq.f32.partialorder %v274, inf
        %v295 = vsel %vm294, %v274, %v293
        %vm296 = vcmp.eq.f32.partialorder %v274, 0.0
        %v297 = vand.u32 %v274, 2147483648
        %v298 = vsel %vm296, %v297, %v295
        %v299 = vadd.f32 %v286, 1e-05
        %v300 = vadd.f32 %v298, 1e-05
        %v301 = vrcp.pop %v299
        %v302 = vmul.f32 %v299, %v301
        %v303 = vsub.f32 1.0, %v302
        %v304 = vmul.f32 %v301, %v303
        %v305 = vadd.f32 %v301, %v304
        %vm306 = vweird.f32 %v299
        %vm307 = vweird.f32 %v301
        %vm308 = vmor %vm306, %vm307
        %v309 = vsel %vm308, %v301, %v305
        %v310 = vand.u32 2147483647, %v299
        %vm311 = vcmp.eq.f32.partialorder %v310, 8.507059e+37
        %v312 = vand.u32 %v299, 2147483648
        %v313 = vor.u32 1.1754944e-38, %v312
        %v314 = vsel %vm311, %v313, %v309
        %v315 = vrcp.pop %v300
        %v316 = vmul.f32 %v300, %v315
        %v317 = vsub.f32 1.0, %v316
        %v318 = vmul.f32 %v315, %v317
        %v319 = vadd.f32 %v315, %v318
        %vm320 = vweird.f32 %v300
        %vm321 = vweird.f32 %v315
        %vm322 = vmor %vm320, %vm321
        %v323 = vsel %vm322, %v315, %v319
        %v324 = vand.u32 2147483647, %v300
        %vm325 = vcmp.eq.f32.partialorder %v324, 8.507059e+37
        %v326 = vand.u32 %v300, 2147483648
        %v327 = vor.u32 1.1754944e-38, %v326
        %v328 = vsel %vm325, %v327, %v323
        %v329 = vld [vmem:[%s1] sm:$0xff]
        %v330 = vld [vmem:[%s1 + $0x8] sm:$0xff]
        %v331 = vld [vmem:[%s1 + $0x10] sm:$0xff]
        %v332 = vld [vmem:[%s1 + $0x18] sm:$0xff]
        %v333 = vld [vmem:[%s2] sm:$0xff]
        %v334 = vld [vmem:[%s2 + $0x8] sm:$0xff]
        %v335 = vld [vmem:[%s2 + $0x10] sm:$0xff]
        %v336 = vld [vmem:[%s2 + $0x18] sm:$0xff]
        %v337 = vmul.f32 %v239, %v314
        %v338 = vmul.f32 %v240, %v328
        %v339 = vmul.f32 %v241, %v314
        %v340 = vmul.f32 %v242, %v328
        %v341 = vmul.f32 %v243, %v314
        %v342 = vmul.f32 %v244, %v328
        %v343 = vmul.f32 %v245, %v314
        %v344 = vmul.f32 %v246, %v328
        %346 = vset.pattern.permute.xlu0 0
        %347 = vperm.xlu0 %346, %v329
        %v348 = vpop.permute.xlu0 %347
        %351 = vset.pattern.permute.xlu0 0
        %352 = vperm.xlu0 %351, %v330
        %v353 = vpop.permute.xlu0 %352
        %356 = vset.pattern.permute.xlu0 0
        %357 = vperm.xlu0 %356, %v331
        %v358 = vpop.permute.xlu0 %357
        %361 = vset.pattern.permute.xlu0 0
        %362 = vperm.xlu0 %361, %v332
        %v363 = vpop.permute.xlu0 %362
        %v365 = vmul.f32 %v337, %v348
        %v366 = vmul.f32 %v338, %v348
        %v367 = vmul.f32 %v339, %v353
        %v368 = vmul.f32 %v340, %v353
        %v369 = vmul.f32 %v341, %v358
        %v370 = vmul.f32 %v342, %v358
        %v371 = vmul.f32 %v343, %v363
        %v372 = vmul.f32 %v344, %v363
        %374 = vset.pattern.permute.xlu0 0
        %375 = vperm.xlu0 %374, %v333
        %v376 = vpop.permute.xlu0 %375
        %379 = vset.pattern.permute.xlu0 0
        %380 = vperm.xlu0 %379, %v334
        %v381 = vpop.permute.xlu0 %380
        %384 = vset.pattern.permute.xlu0 0
        %385 = vperm.xlu0 %384, %v335
        %v386 = vpop.permute.xlu0 %385
        %389 = vset.pattern.permute.xlu0 0
        %390 = vperm.xlu0 %389, %v336
        %v391 = vpop.permute.xlu0 %390
        %v393 = vadd.f32 %v365, %v376
        %v394 = vadd.f32 %v366, %v376
        %v395 = vadd.f32 %v367, %v381
        %v396 = vadd.f32 %v368, %v381
        %v397 = vadd.f32 %v369, %v386
        %v398 = vadd.f32 %v370, %v386
        %v399 = vadd.f32 %v371, %v391
        %v400 = vadd.f32 %v372, %v391
        %401 = vst [vmem:[%s208] sm:$0xff] %v393
        %402 = vst [vmem:[%s208 + $0x8] sm:$0xff] %v394
        %403 = vst [vmem:[%s208 + $0x10] sm:$0xff] %v395
        %404 = vst [vmem:[%s208 + $0x18] sm:$0xff] %v396
        %405 = vst [vmem:[%s208 + $0x20] sm:$0xff] %v397
        %406 = vst [vmem:[%s208 + $0x28] sm:$0xff] %v398
        %407 = vst [vmem:[%s208 + $0x30] sm:$0xff] %v399
        %408 = vst [vmem:[%s208 + $0x38] sm:$0xff] %v400
        %s409 = sand.u32 %s112, 1
        %s410 = scalar_lea.sflag [#allocation4], %s409
        %s411 = sand.u32 %s112, 1
        %s412 = smul.addr %s411, 64
        %s413 = scalar_lea.vmem [#allocation5], %s412
        // Predicated region
        $region37: #{tpu_custom_call.1} parent=31 // pred_check
          %p414 = pneg %p122
        $region38: #{tpu_custom_call.1} parent=31 // pred_check_branch
          %416 = sbr.rel (%p414) target = $region40
        $region39: #{tpu_custom_call.1} parent=31 // pred_region
          %s417 = smul.u32 2, %s25
          %419 = vsyncadd %s410, 0
          %s420 = smul.addr %s24, 8
          %s421 = sadd.s32 %s417, %s420
          %s422 = smul.addr %s421, 8
          %s423 = scalar_lea.hbm %s3, %s422
          %s424 = sshll.u32 %s413, 4
          %s425 = int_to_ptr.vmem [resolvable:$true] %s424
          %s426 = sshll.u32 %s423, 4
          %s427 = int_to_ptr.hbm [resolvable:$true] %s426
          %432 = dma.vmem_to_hbm [thread:$0]  %s425, 1024, %s427, %s410, 256, 256, 16
        $region40: #{tpu_custom_call.1} parent=31 // pred_fallthru
          _
      $region32: #{tpu_custom_call.1} parent=5 // pred_fallthru
        _
      %p433 = scmp.le.s32.totalorder 2, %s15
      // Predicated region
      $region41: #{tpu_custom_call.1} parent=5 // pred_check
        %p434 = pneg %p433
      $region42: #{tpu_custom_call.1} parent=5 // pred_check_branch
        %436 = sbr.rel (%p434) target = $region44
      $region43: #{tpu_custom_call.1} parent=5 // pred_region
        %s437 = ssub.s32 %s15, 2
        // Predicated region
        $region45: #{tpu_custom_call.1} parent=43 // pred_check
          %p438 = pneg %p128
        $region46: #{tpu_custom_call.1} parent=43 // pred_check_branch
          %440 = sbr.rel (%p438) target = $region48
        $region47: #{tpu_custom_call.1} parent=43 // pred_region
          %s441 = sand.u32 %s113, 1
          %s442 = scalar_lea.sflag [#allocation4], %s441
          %s443 = sand.u32 %s113, 1
          %s444 = smul.addr %s443, 64
          %s445 = scalar_lea.vmem [#allocation5], %s444
          %447 = dma.done %s442, 1024
        $region48: #{tpu_custom_call.1} parent=43 // pred_fallthru
          _
      $region44: #{tpu_custom_call.1} parent=5 // pred_fallthru
        _
    $region6: #{tpu_custom_call.1} parent=1 // loop_footer
      %s19 = sadd.s32 1, %s15
    $region7: #{tpu_custom_call.1} parent=1 // loop_footer_branch
      %14 = sbr.rel target = $region3
    $region8: #{tpu_custom_call.1} parent=1 // loop_exit
      _
    %448 = vsyncpa [#allocation3], 1
    %s449 = scalar_lea.sflag [#allocation3], 1
    %450 = vsyncpa %s449, 1
    %451 = vsyncpa [#allocation4], 1
    %s452 = scalar_lea.sflag [#allocation4], 1
    %453 = vsyncpa %s452, 1

</llo_original>
